<compile_context>
chip_gen: v5e
topology: v5e:2x2
jax: 0.10.0
libtpu: 0.0.40
codegen_flags: <defaults>
</compile_context>

<pallas_src>
import functools

import jax
import jax.numpy as jnp
from jax.experimental import pallas as pl
from jax.experimental.pallas import tpu as pltpu


def _attention_kernel(hid_ref, mask_ref, w_ref, b_ref, q_ref,
                      out_ref, scores_ref, *, matmul_dtype):
    # hid_ref:    (TB, S, H)  block of hidden states (TB batch rows per grid step)
    # mask_ref:   (TB, S)     1.0 = keep, 0.0 = pad
    # w_ref:      (H, H)      shared projection weight
    # b_ref:      (1, H)      shared projection bias
    # q_ref:      (1, H)      shared attention query vector
    # out_ref:    (TB, H)     pooled outputs
    # scores_ref: (TB, S)     softmax attention scores (pre re-mask), as in torch
    TB, S, H = hid_ref.shape

    # ---- projection: one big (TB*S, H) x (H, H) MXU matmul -------------------
    hid = hid_ref[...].reshape(TB * S, H)
    key = jnp.dot(hid.astype(matmul_dtype), w_ref[...].astype(matmul_dtype),
                  preferred_element_type=jnp.float32) + b_ref[...]   # (TB*S, H) f32
    key3 = key.reshape(TB, S, H)

    # ---- logits[b, s] = key[b, s, :] . q   (contract H; no key.T transpose) ---
    q = q_ref[...][None]                                 # (1, 1, H)
    logits = jnp.sum(key3 * q, axis=-1)                  # (TB, S), lane reduce

    # ---- masked softmax over the sequence axis (torch dim=1) -----------------
    mask = mask_ref[...]                                  # (TB, S)
    neg_big = jnp.float32(-1e32)
    masked_logits = jnp.where(mask == 0, neg_big, logits)
    # Note: an all-zero mask row (e.g. batch padding) yields uniform 1/S scores,
    # matching the torch reference; the pooled output is zeroed by the re-mask.
    m = jnp.max(masked_logits, axis=-1, keepdims=True)
    e = jnp.exp(masked_logits - m)
    denom = jnp.sum(e, axis=-1, keepdims=True)
    attn = e * pl.reciprocal(denom, approx=True)          # EUP recip (free slot)
    scores_ref[...] = attn

    # ---- weighted sum:  out[b] = sum_s attn[b, s] * key[b, s, :] --------------
    # Reformulated as ONE 2-D MXU matmul: build a (TB, TB*S) block-diagonal score
    # matrix and multiply with the flat (TB*S, H) key. Avoids batched tiny
    # matmuls and any cross-lane transpose.
    masked_attn = jnp.where(mask == 0, jnp.float32(0.0), attn)        # (TB, S)
    row = jax.lax.broadcasted_iota(jnp.int32, (TB, TB * S), 0)
    col = jax.lax.broadcasted_iota(jnp.int32, (TB, TB * S), 1)
    in_block = (col >= row * S) & (col < (row + 1) * S)
    attn_tiled = jnp.tile(masked_attn, (1, TB))                       # (TB, TB*S)
    attn_bd = jnp.where(in_block, attn_tiled, jnp.float32(0.0))       # block-diag
    out_ref[...] = jnp.dot(attn_bd, key, preferred_element_type=jnp.float32)


def _pick_block_b(S, H):
    """Batch rows per grid step: fill the MXU, stay inside a safe VMEM budget."""
    tb = pl.cdiv(128, S)                      # >= 128 rows in the flat projection
    tb = max(8, ((tb + 7) // 8) * 8)          # sublane-friendly (multiple of 8)
    # Keep the double-buffered hidden tile <= 8 MiB: fits v5e's 16 MiB scoped
    # default and leaves headroom on v7x's 64 MiB physical VMEM.
    cap = (8 * 1024 * 1024) // (2 * S * H * 4)
    cap = max(8, (cap // 8) * 8)
    return min(tb, cap)


def attention_forward(batch_hidden, batch_masks, weight, bias, query,
                      *, block_b=None, matmul_dtype=jnp.float32):
    B, S, H = batch_hidden.shape
    tb = _pick_block_b(S, H) if block_b is None else block_b

    # Pad the batch so it tiles evenly into TB-sized blocks; padded rows carry an
    # all-zero mask and are sliced off below.
    b_pad = pl.cdiv(B, tb) * tb
    batch_hidden = batch_hidden.astype(jnp.float32)
    batch_masks = batch_masks.astype(jnp.float32)
    if b_pad != B:
        batch_hidden = jnp.pad(batch_hidden, ((0, b_pad - B), (0, 0), (0, 0)))
        batch_masks = jnp.pad(batch_masks, ((0, b_pad - B), (0, 0)))

    bias2 = bias.reshape(1, H).astype(jnp.float32)
    query2 = query.reshape(1, H).astype(jnp.float32)
    weight = weight.astype(jnp.float32)

    grid = (b_pad // tb,)

    grid_spec = pltpu.PrefetchScalarGridSpec(
        num_scalar_prefetch=0,
        grid=grid,
        in_specs=[
            pl.BlockSpec((tb, S, H), lambda b: (b, 0, 0)),   # batch_hidden block
            pl.BlockSpec((tb, S), lambda b: (b, 0)),         # batch_masks block
            pl.BlockSpec((H, H), lambda b: (0, 0)),          # weight (shared)
            pl.BlockSpec((1, H), lambda b: (0, 0)),          # bias   (shared)
            pl.BlockSpec((1, H), lambda b: (0, 0)),          # query  (shared)
        ],
        out_specs=[
            pl.BlockSpec((tb, H), lambda b: (b, 0)),         # batch_outputs
            pl.BlockSpec((tb, S), lambda b: (b, 0)),         # attn_scores
        ],
    )

    flops = 2 * b_pad * S * H * H + 2 * b_pad * S * H + 2 * b_pad * (tb * S) * H
    bytes_accessed = 4 * (b_pad * S * H + H * H + 2 * H
                          + 2 * b_pad * S + b_pad * H)
    cost = pl.CostEstimate(flops=flops, transcendentals=b_pad * S,
                           bytes_accessed=bytes_accessed)

    out, scores = pl.pallas_call(
        functools.partial(_attention_kernel, matmul_dtype=matmul_dtype),
        out_shape=(
            jax.ShapeDtypeStruct((b_pad, H), jnp.float32),   # batch_outputs
            jax.ShapeDtypeStruct((b_pad, S), jnp.float32),   # attn_scores
        ),
        grid_spec=grid_spec,
        compiler_params=pltpu.CompilerParams(
            dimension_semantics=("parallel",),   # batch blocks split across TCs (v7x)
            vmem_limit_bytes=32 * 1024 * 1024,
        ),
        cost_estimate=cost,
    )(batch_hidden, batch_masks, weight, bias2, query2)

    return out[:B], scores[:B]


if __name__ == "__main__":
    B, S, H = 2, 8, 32

    root = jax.random.PRNGKey(0)
    k_hid, k_w, k_q, _ = jax.random.split(root, 4)

    # Module parameters (matching the torch __init__ shapes / init scheme):
    weight = 0.05 * jax.random.normal(k_w, (H, H), dtype=jnp.float32)
    bias = jnp.zeros((H,), dtype=jnp.float32)
    query = 0.05 * jax.random.normal(k_q, (H,), dtype=jnp.float32)

    # Example inputs: first batch keeps 6 tokens, second keeps 4.
    batch_hidden = jax.random.normal(k_hid, (B, S, H), dtype=jnp.float32)
    lengths = jnp.array([6, 4], dtype=jnp.int32)
    batch_masks = (jnp.arange(S)[None, :] < lengths[:, None]).astype(jnp.float32)

    batch_outputs, attn_scores = attention_forward(
        batch_hidden, batch_masks, weight, bias, query)
    jax.block_until_ready((batch_outputs, attn_scores))

    # Pure-JAX reference of the same math.
    key_ref = jnp.einsum("bsh,hk->bsk", batch_hidden, weight) + bias
    logits_ref = jnp.einsum("bsh,h->bs", key_ref, query)
    masked = jnp.where(batch_masks == 0, -1e32, logits_ref)
    scores_ref = jax.nn.softmax(masked, axis=1)
    scores_masked = jnp.where(batch_masks == 0, 0.0, scores_ref)
    out_ref = jnp.einsum("bs,bsh->bh", scores_masked, key_ref)

    assert batch_outputs.shape == (B, H) and attn_scores.shape == (B, S)
    # Tolerance leaves headroom for the approximate EUP reciprocal in the softmax.
    assert jnp.allclose(batch_outputs, out_ref, atol=5e-3, rtol=5e-3)
    assert jnp.allclose(attn_scores, scores_ref, atol=5e-3, rtol=5e-3)

    print("KERNEL_OK")
</pallas_src>

<mosaic_0001>
module attributes {stable_mosaic.version = 11 : i64} {
  func.func @_attention_kernel(%arg0: i32, %arg1: memref<16x8x32xf32, #tpu.memory_space<vmem>>, %arg2: memref<16x8xf32, #tpu.memory_space<vmem>>, %arg3: memref<32x32xf32, #tpu.memory_space<vmem>>, %arg4: memref<1x32xf32, #tpu.memory_space<vmem>>, %arg5: memref<1x32xf32, #tpu.memory_space<vmem>>, %arg6: memref<16x32xf32, #tpu.memory_space<vmem>>, %arg7: memref<16x8xf32, #tpu.memory_space<vmem>>) attributes {dimension_semantics = [#tpu.dimension_semantics<parallel>], iteration_bounds = array<i64: 1>, scalar_prefetch = 0 : i64, scratch_operands = 0 : i64, tpu.core_type = #tpu.core_type<tc>, window_params = [{transform_indices = @transform_0, window_bounds = array<i64: 16, 8, 32>}, {transform_indices = @transform_1, window_bounds = array<i64: 16, 8>}, {pipeline_mode = #tpu.pipeline_mode<synchronous>, transform_indices = @transform_2, window_bounds = array<i64: 32, 32>}, {pipeline_mode = #tpu.pipeline_mode<synchronous>, transform_indices = @transform_3, window_bounds = array<i64: 1, 32>}, {pipeline_mode = #tpu.pipeline_mode<synchronous>, transform_indices = @transform_4, window_bounds = array<i64: 1, 32>}, {transform_indices = @transform_5, window_bounds = array<i64: 16, 32>}, {transform_indices = @transform_6, window_bounds = array<i64: 16, 8>}]} {
    %c0 = arith.constant 0 : index
    %c0_0 = arith.constant 0 : index
    %c0_1 = arith.constant 0 : index
    %0 = vector.load %arg1[%c0, %c0_0, %c0_1] : memref<16x8x32xf32, #tpu.memory_space<vmem>>, vector<16x8x32xf32>
    %1 = vector.shape_cast %0 : vector<16x8x32xf32> to vector<128x32xf32>
    %c0_2 = arith.constant 0 : index
    %c0_3 = arith.constant 0 : index
    %2 = vector.load %arg3[%c0_2, %c0_3] : memref<32x32xf32, #tpu.memory_space<vmem>>, vector<32x32xf32>
    %cst = arith.constant dense<0.000000e+00> : vector<128x32xf32>
    %3 = tpu.matmul %1, %2, %cst {dimension_numbers = #tpu.dot_dimension_numbers<[1], [0], [0], [1], [0, 0, 1, 1], [], []>} : vector<128x32xf32>, vector<32x32xf32>, vector<128x32xf32> -> vector<128x32xf32>
    %c0_4 = arith.constant 0 : index
    %c0_5 = arith.constant 0 : index
    %4 = vector.load %arg4[%c0_4, %c0_5] : memref<1x32xf32, #tpu.memory_space<vmem>>, vector<1x32xf32>
    %5 = vector.broadcast %4 : vector<1x32xf32> to vector<128x32xf32>
    %6 = arith.addf %3, %5 : vector<128x32xf32>
    %7 = vector.shape_cast %6 : vector<128x32xf32> to vector<16x8x32xf32>
    %c0_6 = arith.constant 0 : index
    %c0_7 = arith.constant 0 : index
    %8 = vector.load %arg5[%c0_6, %c0_7] : memref<1x32xf32, #tpu.memory_space<vmem>>, vector<1x32xf32>
    %9 = vector.shape_cast %8 : vector<1x32xf32> to vector<1x1x32xf32>
    %10 = vector.broadcast %9 : vector<1x1x32xf32> to vector<16x8x32xf32>
    %11 = arith.mulf %7, %10 : vector<16x8x32xf32>
    %cst_8 = arith.constant dense<0.000000e+00> : vector<16x8xf32>
    %12 = vector.multi_reduction <add>, %11, %cst_8 [2] : vector<16x8x32xf32> to vector<16x8xf32>
    %c0_9 = arith.constant 0 : index
    %c0_10 = arith.constant 0 : index
    %13 = vector.load %arg2[%c0_9, %c0_10] : memref<16x8xf32, #tpu.memory_space<vmem>>, vector<16x8xf32>
    %cst_11 = arith.constant 0.000000e+00 : f32
    %14 = vector.broadcast %cst_11 : f32 to vector<16x8xf32>
    %15 = arith.cmpf oeq, %13, %14 : vector<16x8xf32>
    %cst_12 = arith.constant -1.000000e+32 : f32
    %16 = vector.broadcast %cst_12 : f32 to vector<16x8xf32>
    %17 = arith.select %15, %16, %12 : vector<16x8xi1>, vector<16x8xf32>
    %cst_13 = arith.constant dense<0xFF800000> : vector<16xf32>
    %18 = vector.multi_reduction <maximumf>, %17, %cst_13 [1] : vector<16x8xf32> to vector<16xf32>
    %19 = vector.shape_cast %18 : vector<16xf32> to vector<16x1xf32>
    %20 = vector.broadcast %19 : vector<16x1xf32> to vector<16x8xf32>
    %21 = arith.subf %17, %20 : vector<16x8xf32>
    %22 = math.exp %21 : vector<16x8xf32>
    %cst_14 = arith.constant dense<0.000000e+00> : vector<16xf32>
    %23 = vector.multi_reduction <add>, %22, %cst_14 [1] : vector<16x8xf32> to vector<16xf32>
    %24 = vector.shape_cast %23 : vector<16xf32> to vector<16x1xf32>
    %25 = tpu.reciprocal %24 {approx = true} : vector<16x1xf32> -> vector<16x1xf32>
    %26 = vector.broadcast %25 : vector<16x1xf32> to vector<16x8xf32>
    %27 = arith.mulf %22, %26 : vector<16x8xf32>
    %c0_15 = arith.constant 0 : index
    %c0_16 = arith.constant 0 : index
    %28 = vector.load %arg7[%c0_15, %c0_16] : memref<16x8xf32, #tpu.memory_space<vmem>>, vector<16x8xf32>
    tpu.vector_store %arg7[%c0_15, %c0_16], %27 {strides = array<i32>} : memref<16x8xf32, #tpu.memory_space<vmem>>, vector<16x8xf32>,
    %cst_17 = arith.constant 0.000000e+00 : f32
    %29 = vector.broadcast %cst_17 : f32 to vector<16x8xf32>
    %30 = arith.cmpf oeq, %13, %29 : vector<16x8xf32>
    %cst_18 = arith.constant 0.000000e+00 : f32
    %31 = vector.broadcast %cst_18 : f32 to vector<16x8xf32>
    %32 = arith.select %30, %31, %27 : vector<16x8xi1>, vector<16x8xf32>
    %33 = tpu.iota {dimensions = array<i32: 0>} : vector<16x128xi32>
    %34 = tpu.iota {dimensions = array<i32: 1>} : vector<16x128xi32>
    %c8_i32 = arith.constant 8 : i32
    %35 = vector.broadcast %c8_i32 : i32 to vector<16x128xi32>
    %36 = arith.muli %33, %35 : vector<16x128xi32>
    %37 = arith.cmpi sge, %34, %36 : vector<16x128xi32>
    %c1_i32 = arith.constant 1 : i32
    %38 = vector.broadcast %c1_i32 : i32 to vector<16x128xi32>
    %39 = arith.addi %33, %38 : vector<16x128xi32>
    %c8_i32_19 = arith.constant 8 : i32
    %40 = vector.broadcast %c8_i32_19 : i32 to vector<16x128xi32>
    %41 = arith.muli %39, %40 : vector<16x128xi32>
    %42 = arith.cmpi slt, %34, %41 : vector<16x128xi32>
    %43 = arith.andi %37, %42 : vector<16x128xi1>
    %44 = tpu.concatenate %32, %32, %32, %32, %32, %32, %32, %32, %32, %32, %32, %32, %32, %32, %32, %32 in 1 : vector<16x8xf32>, vector<16x8xf32>, vector<16x8xf32>, vector<16x8xf32>, vector<16x8xf32>, vector<16x8xf32>, vector<16x8xf32>, vector<16x8xf32>, vector<16x8xf32>, vector<16x8xf32>, vector<16x8xf32>, vector<16x8xf32>, vector<16x8xf32>, vector<16x8xf32>, vector<16x8xf32>, vector<16x8xf32> -> vector<16x128xf32>
    %cst_20 = arith.constant 0.000000e+00 : f32
    %45 = vector.broadcast %cst_20 : f32 to vector<16x128xf32>
    %46 = arith.select %43, %44, %45 : vector<16x128xi1>, vector<16x128xf32>
    %cst_21 = arith.constant dense<0.000000e+00> : vector<16x32xf32>
    %47 = tpu.matmul %46, %6, %cst_21 {dimension_numbers = #tpu.dot_dimension_numbers<[1], [0], [0], [1], [0, 0, 1, 1], [], []>} : vector<16x128xf32>, vector<128x32xf32>, vector<16x32xf32> -> vector<16x32xf32>
    %c0_22 = arith.constant 0 : index
    %c0_23 = arith.constant 0 : index
    %48 = vector.load %arg6[%c0_22, %c0_23] : memref<16x32xf32, #tpu.memory_space<vmem>>, vector<16x32xf32>
    tpu.vector_store %arg6[%c0_22, %c0_23], %47 {strides = array<i32>} : memref<16x32xf32, #tpu.memory_space<vmem>>, vector<16x32xf32>,
    return
  }
  func.func @transform_0(%arg0: i32) -> (i32, i32, i32) {
    %c0_i32 = arith.constant 0 : i32
    %c0_i32_0 = arith.constant 0 : i32
    %c0_i32_1 = arith.constant 0 : i32
    return %arg0, %c0_i32, %c0_i32_0 : i32, i32, i32
  }
  func.func @transform_1(%arg0: i32) -> (i32, i32) {
    %c0_i32 = arith.constant 0 : i32
    %c0_i32_0 = arith.constant 0 : i32
    return %arg0, %c0_i32 : i32, i32
  }
  func.func @transform_2(%arg0: i32) -> (i32, i32) {
    %c0_i32 = arith.constant 0 : i32
    %c0_i32_0 = arith.constant 0 : i32
    %c0_i32_1 = arith.constant 0 : i32
    return %c0_i32, %c0_i32_0 : i32, i32
  }
  func.func @transform_3(%arg0: i32) -> (i32, i32) {
    %c0_i32 = arith.constant 0 : i32
    %c0_i32_0 = arith.constant 0 : i32
    %c0_i32_1 = arith.constant 0 : i32
    return %c0_i32, %c0_i32_0 : i32, i32
  }
  func.func @transform_4(%arg0: i32) -> (i32, i32) {
    %c0_i32 = arith.constant 0 : i32
    %c0_i32_0 = arith.constant 0 : i32
    %c0_i32_1 = arith.constant 0 : i32
    return %c0_i32, %c0_i32_0 : i32, i32
  }
  func.func @transform_5(%arg0: i32) -> (i32, i32) {
    %c0_i32 = arith.constant 0 : i32
    %c0_i32_0 = arith.constant 0 : i32
    return %arg0, %c0_i32 : i32, i32
  }
  func.func @transform_6(%arg0: i32) -> (i32, i32) {
    %c0_i32 = arith.constant 0 : i32
    %c0_i32_0 = arith.constant 0 : i32
    return %arg0, %c0_i32 : i32, i32
  }
}

</mosaic_0001>

<llo_original>
// kernel: tpu_custom_call.1
$region0: #{tpu_custom_call.1}
  #allocation0 [shape = 'u32[]', space=smem, size = 0x4, offset = 0x4, fixed_abs, tag = 'smem constant byte address 0x4 - core index']
  #allocation1 [shape = 'u32[72,128]{1,0:T(1,128)}', space=vmem, size = 0x9000, scoped, tag = 'internal scratch']
  %s0 = inlined_call_operand.hbm [shape: f32[16,8,32], index: 0, kind: input, shape index: {}]
  %s1 = inlined_call_operand.vmem [shape: f32[16,8], index: 1, kind: input, shape index: {}]
  %s2 = inlined_call_operand.hbm [shape: f32[32,32], index: 2, kind: input, shape index: {}]
  %s3 = inlined_call_operand.vmem [shape: f32[1,32], index: 3, kind: input, shape index: {}]
  %s4 = inlined_call_operand.vmem [shape: f32[1,32], index: 4, kind: input, shape index: {}]
  %s5 = inlined_call_operand.hbm [shape: f32[16,32], index: 5, kind: output, shape index: {0}]
  %s6 = inlined_call_operand.vmem [shape: f32[16,8], index: 6, kind: output, shape index: {1}]
  %7 = xla_tuple %s5, %s6
  %s8 = sld [smem:[#allocation0]]
  $region46: #{tpu_custom_call.1} parent=0
    _
  %s10 = ssub.s32 1, %s8
  %s11 = scalar_select 0, %s10, %s8
  $region1: #{tpu_custom_call.1} parent=0
    #allocation2 [shape = 'u8[65536]{0}', space=vmem, size = 0x10000, scoped, tag = 'input window, operand 0, single buffered']
    #allocation3 [shape = 's32[1]{0}', space=sflag, size = 0x4, scoped, tag = 'scoped memory for tpu_custom_call.1']
    #allocation4 [shape = 's32[1]{0}', space=sflag, size = 0x4, scoped, tag = 'scoped memory for tpu_custom_call.1']
    #allocation5 [shape = 'u8[16384]{0}', space=vmem, size = 0x4000, scoped, tag = 'input window, operand 2, single buffered']
    #allocation6 [shape = 's32[1]{0}', space=sflag, size = 0x4, scoped, tag = 'scoped memory for tpu_custom_call.1']
    #allocation7 [shape = 'u8[8192]{0}', space=vmem, size = 0x2000, scoped, tag = 'output window, operand 0, single buffered']
    %12 = vsyncpa [#allocation3], 0
    %13 = vsyncpa [#allocation6], 0
    %14 = vsyncpa [#allocation4], 0
    // Predicated region
    $region2: #{tpu_custom_call.1} parent=1 // pred_check
      _
    $region3: #{tpu_custom_call.1} parent=1 // pred_check_branch
      %16 = sbr.rel (0) target = $region5
    $region4: #{tpu_custom_call.1} parent=1 // pred_region
      %18 = vsyncadd [#allocation3], 0
      %s19 = sshll.u32 %s0, 4
      %s20 = int_to_ptr.hbm [resolvable:$true] %s19
      %s21 = sshll.u32 [#allocation2], 4
      %s22 = int_to_ptr.vmem [resolvable:$true] %s21
      %27 = dma.hbm_to_vmem [thread:$0]  %s20, 2048, %s22, [#allocation3], 128, 128, 8
    $region5: #{tpu_custom_call.1} parent=1 // pred_fallthru
      _
    // Predicated region
    $region6: #{tpu_custom_call.1} parent=1 // pred_check
      _
    $region7: #{tpu_custom_call.1} parent=1 // pred_check_branch
      %29 = sbr.rel (0) target = $region9
    $region8: #{tpu_custom_call.1} parent=1 // pred_region
      _
    $region9: #{tpu_custom_call.1} parent=1 // pred_fallthru
      _
    // Predicated region
    $region10: #{tpu_custom_call.1} parent=1 // pred_check
      _
    $region11: #{tpu_custom_call.1} parent=1 // pred_check_branch
      %31 = sbr.rel (0) target = $region13
    $region12: #{tpu_custom_call.1} parent=1 // pred_region
      %33 = vsyncadd [#allocation6], 0
      %s34 = sshll.u32 %s2, 4
      %s35 = int_to_ptr.hbm [resolvable:$true] %s34
      %s36 = sshll.u32 [#allocation5], 4
      %s37 = int_to_ptr.vmem [resolvable:$true] %s36
      %42 = dma.hbm_to_vmem [thread:$0]  %s35, 512, %s37, [#allocation6], 128, 128, 8
    $region13: #{tpu_custom_call.1} parent=1 // pred_fallthru
      _
    // Predicated region
    $region14: #{tpu_custom_call.1} parent=1 // pred_check
      _
    $region15: #{tpu_custom_call.1} parent=1 // pred_check_branch
      %44 = sbr.rel (0) target = $region17
    $region16: #{tpu_custom_call.1} parent=1 // pred_region
      _
    $region17: #{tpu_custom_call.1} parent=1 // pred_fallthru
      _
    // Predicated region
    $region18: #{tpu_custom_call.1} parent=1 // pred_check
      _
    $region19: #{tpu_custom_call.1} parent=1 // pred_check_branch
      %46 = sbr.rel (0) target = $region21
    $region20: #{tpu_custom_call.1} parent=1 // pred_region
      _
    $region21: #{tpu_custom_call.1} parent=1 // pred_fallthru
      _
    // Predicated region
    $region22: #{tpu_custom_call.1} parent=1 // pred_check
      _
    $region23: #{tpu_custom_call.1} parent=1 // pred_check_branch
      %48 = sbr.rel (0) target = $region25
    $region24: #{tpu_custom_call.1} parent=1 // pred_region
      %50 = dma.done [#allocation3], 2048
    $region25: #{tpu_custom_call.1} parent=1 // pred_fallthru
      _
    // Predicated region
    $region26: #{tpu_custom_call.1} parent=1 // pred_check
      _
    $region27: #{tpu_custom_call.1} parent=1 // pred_check_branch
      %52 = sbr.rel (0) target = $region29
    $region28: #{tpu_custom_call.1} parent=1 // pred_region
      %54 = dma.done [#allocation6], 512
    $region29: #{tpu_custom_call.1} parent=1 // pred_fallthru
      _
    %v55 = vld [vmem:[#allocation2] sm:$0xff]
    %v56 = vld [vmem:[#allocation2 + $0x8] sm:$0xff]
    %v57 = vld [vmem:[#allocation2 + $0x10] sm:$0xff]
    %v58 = vld [vmem:[#allocation2 + $0x18] sm:$0xff]
    %v59 = vld [vmem:[#allocation2 + $0x20] sm:$0xff]
    %v60 = vld [vmem:[#allocation2 + $0x28] sm:$0xff]
    %v61 = vld [vmem:[#allocation2 + $0x30] sm:$0xff]
    %v62 = vld [vmem:[#allocation2 + $0x38] sm:$0xff]
    %v63 = vld [vmem:[#allocation2 + $0x40] sm:$0xff]
    %v64 = vld [vmem:[#allocation2 + $0x48] sm:$0xff]
    %v65 = vld [vmem:[#allocation2 + $0x50] sm:$0xff]
    %v66 = vld [vmem:[#allocation2 + $0x58] sm:$0xff]
    %v67 = vld [vmem:[#allocation2 + $0x60] sm:$0xff]
    %v68 = vld [vmem:[#allocation2 + $0x68] sm:$0xff]
    %v69 = vld [vmem:[#allocation2 + $0x70] sm:$0xff]
    %v70 = vld [vmem:[#allocation2 + $0x78] sm:$0xff]
    %v71 = vld [vmem:[#allocation5] sm:$0xff]
    %v72 = vld [vmem:[#allocation5 + $0x8] sm:$0xff]
    %v73 = vld [vmem:[#allocation5 + $0x10] sm:$0xff]
    %v74 = vld [vmem:[#allocation5 + $0x18] sm:$0xff]
    %v75 = vld [vmem:[%s3] sm:$0x1]
    %v77 = vperm.slane %v75, 0
    %vm79 = vcmask 261120
    %v81 = vsel %vm79, %v55, 0
    %v84 = vsel %vm79, %v56, 0
    %v87 = vsel %vm79, %v57, 0
    %v90 = vsel %vm79, %v58, 0
    %v93 = vsel %vm79, %v59, 0
    %v96 = vsel %vm79, %v60, 0
    %v99 = vsel %vm79, %v61, 0
    %v102 = vsel %vm79, %v62, 0
    %v105 = vsel %vm79, %v63, 0
    %v108 = vsel %vm79, %v64, 0
    %v111 = vsel %vm79, %v65, 0
    %v114 = vsel %vm79, %v66, 0
    %v117 = vsel %vm79, %v67, 0
    %v120 = vsel %vm79, %v68, 0
    %v123 = vsel %vm79, %v69, 0
    %v126 = vsel %vm79, %v70, 0
    %128 = vmatpush.msra.mxu0 0.0
    %129 = vmatpush.msra.mxu0 0.0
    %130 = vmatpush.msra.mxu0 0.0
    %131 = vmatpush.msra.mxu0 0.0
    %132 = vmatpush.msra.mxu0 0.0
    %133 = vmatpush.msra.mxu0 0.0
    %134 = vmatpush.msra.mxu0 0.0
    %135 = vmatpush.msra.mxu0 0.0
    %136 = vmatpush.msra.mxu0 0.0
    %137 = vmatpush.msra.mxu0 0.0
    %138 = vmatpush.msra.mxu0 0.0
    %139 = vmatpush.msra.mxu0 0.0
    %140 = vmatpush.msra.mxu0 %v74
    %141 = vmatpush.msra.mxu0 %v73
    %142 = vmatpush.msra.mxu0 %v72
    %143 = vmatpush.msra.mxu0 %v71
    %144 = vmatmul.f32.gmra.mxu0 %v81
    %v145 = vpop.f32.mrf.mxu0
    %v146 = vadd.f32 %v77, %v145
    %147 = vmatmul.f32.gmra.mxu0 %v84
    %v148 = vpop.f32.mrf.mxu0
    %v149 = vadd.f32 %v77, %v148
    %150 = vmatmul.f32.gmra.mxu0 %v87
    %v151 = vpop.f32.mrf.mxu0
    %v152 = vadd.f32 %v77, %v151
    %153 = vmatmul.f32.gmra.mxu0 %v90
    %v154 = vpop.f32.mrf.mxu0
    %v155 = vadd.f32 %v77, %v154
    %156 = vmatmul.f32.gmra.mxu0 %v93
    %v157 = vpop.f32.mrf.mxu0
    %v158 = vadd.f32 %v77, %v157
    %159 = vmatmul.f32.gmra.mxu0 %v96
    %v160 = vpop.f32.mrf.mxu0
    %v161 = vadd.f32 %v77, %v160
    %162 = vmatmul.f32.gmra.mxu0 %v99
    %v163 = vpop.f32.mrf.mxu0
    %v164 = vadd.f32 %v77, %v163
    %165 = vmatmul.f32.gmra.mxu0 %v102
    %v166 = vpop.f32.mrf.mxu0
    %v167 = vadd.f32 %v77, %v166
    %168 = vmatmul.f32.gmra.mxu0 %v105
    %v169 = vpop.f32.mrf.mxu0
    %v170 = vadd.f32 %v77, %v169
    %171 = vmatmul.f32.gmra.mxu0 %v108
    %v172 = vpop.f32.mrf.mxu0
    %v173 = vadd.f32 %v77, %v172
    %174 = vmatmul.f32.gmra.mxu0 %v111
    %v175 = vpop.f32.mrf.mxu0
    %v176 = vadd.f32 %v77, %v175
    %177 = vmatmul.f32.gmra.mxu0 %v114
    %v178 = vpop.f32.mrf.mxu0
    %v179 = vadd.f32 %v77, %v178
    %180 = vmatmul.f32.gmra.mxu0 %v117
    %v181 = vpop.f32.mrf.mxu0
    %v182 = vadd.f32 %v77, %v181
    %183 = vmatmul.f32.gmra.mxu0 %v120
    %v184 = vpop.f32.mrf.mxu0
    %v185 = vadd.f32 %v77, %v184
    %186 = vmatmul.f32.gmra.mxu0 %v123
    %v187 = vpop.f32.mrf.mxu0
    %v188 = vadd.f32 %v77, %v187
    %189 = vmatmul.f32.gmra.mxu0 %v126
    %v190 = vpop.f32.mrf.mxu0
    %v191 = vadd.f32 %v77, %v190
    %192 = vdwg.mxu0
    %v193 = vld [vmem:[%s4] sm:$0x1]
    %v195 = vperm.slane %v193, 0
    %v197 = vmul.f32 %v146, %v195
    %v198 = vmul.f32 %v149, %v195
    %v199 = vmul.f32 %v152, %v195
    %v200 = vmul.f32 %v155, %v195
    %v201 = vmul.f32 %v158, %v195
    %v202 = vmul.f32 %v161, %v195
    %v203 = vmul.f32 %v164, %v195
    %v204 = vmul.f32 %v167, %v195
    %v205 = vmul.f32 %v170, %v195
    %v206 = vmul.f32 %v173, %v195
    %v207 = vmul.f32 %v176, %v195
    %v208 = vmul.f32 %v179, %v195
    %v209 = vmul.f32 %v182, %v195
    %v210 = vmul.f32 %v185, %v195
    %v211 = vmul.f32 %v188, %v195
    %v212 = vmul.f32 %v191, %v195
    %v213 = vsel %vm79, %v197, 0.0
    %214 = vadd.xlane.f32.xlu0 %v213
    %v215 = vpop.xlane.xlu0 %214
    %v216 = vsel %vm79, %v198, 0.0
    %217 = vadd.xlane.f32.xlu0 %v216
    %v218 = vpop.xlane.xlu0 %217
    %v219 = vsel %vm79, %v199, 0.0
    %220 = vadd.xlane.f32.xlu0 %v219
    %v221 = vpop.xlane.xlu0 %220
    %v222 = vsel %vm79, %v200, 0.0
    %223 = vadd.xlane.f32.xlu0 %v222
    %v224 = vpop.xlane.xlu0 %223
    %v225 = vsel %vm79, %v201, 0.0
    %226 = vadd.xlane.f32.xlu0 %v225
    %v227 = vpop.xlane.xlu0 %226
    %v228 = vsel %vm79, %v202, 0.0
    %229 = vadd.xlane.f32.xlu0 %v228
    %v230 = vpop.xlane.xlu0 %229
    %v231 = vsel %vm79, %v203, 0.0
    %232 = vadd.xlane.f32.xlu0 %v231
    %v233 = vpop.xlane.xlu0 %232
    %v234 = vsel %vm79, %v204, 0.0
    %235 = vadd.xlane.f32.xlu0 %v234
    %v236 = vpop.xlane.xlu0 %235
    %v237 = vsel %vm79, %v205, 0.0
    %238 = vadd.xlane.f32.xlu0 %v237
    %v239 = vpop.xlane.xlu0 %238
    %v240 = vsel %vm79, %v206, 0.0
    %241 = vadd.xlane.f32.xlu0 %v240
    %v242 = vpop.xlane.xlu0 %241
    %v243 = vsel %vm79, %v207, 0.0
    %244 = vadd.xlane.f32.xlu0 %v243
    %v245 = vpop.xlane.xlu0 %244
    %v246 = vsel %vm79, %v208, 0.0
    %247 = vadd.xlane.f32.xlu0 %v246
    %v248 = vpop.xlane.xlu0 %247
    %v249 = vsel %vm79, %v209, 0.0
    %250 = vadd.xlane.f32.xlu0 %v249
    %v251 = vpop.xlane.xlu0 %250
    %v252 = vsel %vm79, %v210, 0.0
    %253 = vadd.xlane.f32.xlu0 %v252
    %v254 = vpop.xlane.xlu0 %253
    %v255 = vsel %vm79, %v211, 0.0
    %256 = vadd.xlane.f32.xlu0 %v255
    %v257 = vpop.xlane.xlu0 %256
    %v258 = vsel %vm79, %v212, 0.0
    %259 = vadd.xlane.f32.xlu0 %v258
    %v260 = vpop.xlane.xlu0 %259
    %v261 = vld [vmem:[%s1] sm:$0xff]
    %v262 = vld [vmem:[%s1 + $0x8] sm:$0xff]
    %vm263 = vcmp.eq.f32.partialorder %v261, 0.0
    %vm264 = vcmp.eq.f32.partialorder %v262, 0.0
    %v281 = vlaneseq
    %v282 = vand.u32 %v281, 127
    %v283 = vperm.slane %v215, %v282
    %v284 = vperm.slane %v218, %v282
    %v285 = vperm.slane %v221, %v282
    %v286 = vperm.slane %v224, %v282
    %v287 = vperm.slane %v227, %v282
    %v288 = vperm.slane %v230, %v282
    %v289 = vperm.slane %v233, %v282
    %v290 = vperm.slane %v236, %v282
    %v291 = vperm.slane %v239, %v282
    %v292 = vperm.slane %v242, %v282
    %v293 = vperm.slane %v245, %v282
    %v294 = vperm.slane %v248, %v282
    %v295 = vperm.slane %v251, %v282
    %v296 = vperm.slane %v254, %v282
    %v297 = vperm.slane %v257, %v282
    %v298 = vperm.slane %v260, %v282
    %vm299 = vcmask 1041409
    %v300 = vsel %vm299, %v284, %v283
    %vm301 = vcmask 1042434
    %v302 = vsel %vm301, %v285, %v300
    %vm303 = vcmask 1043459
    %v304 = vsel %vm303, %v286, %v302
    %vm305 = vcmask 1044484
    %v306 = vsel %vm305, %v287, %v304
    %vm307 = vcmask 1045509
    %v308 = vsel %vm307, %v288, %v306
    %vm309 = vcmask 1046534
    %v310 = vsel %vm309, %v289, %v308
    %vm311 = vcmask 1047559
    %v312 = vsel %vm311, %v290, %v310
    %v313 = vsel %vm299, %v292, %v291
    %v314 = vsel %vm301, %v293, %v313
    %v315 = vsel %vm303, %v294, %v314
    %v316 = vsel %vm305, %v295, %v315
    %v317 = vsel %vm307, %v296, %v316
    %v318 = vsel %vm309, %v297, %v317
    %v319 = vsel %vm311, %v298, %v318
    %v322 = vsel %vm263, -1e+32, %v312
    %v323 = vsel %vm264, -1e+32, %v319
    %vm324 = vcmask 64512
    %v325 = vsel %vm324, %v322, -inf
    %326 = vmax.xlane.f32.xlu0 %v325
    %v327 = vpop.xlane.xlu0 %326
    %v328 = vsel %vm324, %v323, -inf
    %329 = vmax.xlane.f32.xlu0 %v328
    %v330 = vpop.xlane.xlu0 %329
    %v331 = vsub.f32 %v322, %v327
    %v332 = vsub.f32 %v323, %v330
    %v333 = vmul.f32 %v331, 1.442695
    %v334 = vpow.pop %v333
    %v335 = vmul.f32 %v332, 1.442695
    %v336 = vpow.pop %v335
    %v337 = vsel %vm324, %v334, 0.0
    %338 = vadd.xlane.f32.xlu0 %v337
    %v339 = vpop.xlane.xlu0 %338
    %v340 = vsel %vm324, %v336, 0.0
    %341 = vadd.xlane.f32.xlu0 %v340
    %v342 = vpop.xlane.xlu0 %341
    %v343 = vrcp.pop %v339
    %v344 = vrcp.pop %v342
    %v345 = vmul.f32 %v334, %v343
    %v346 = vmul.f32 %v336, %v344
    %347 = vst.msk [vmem:[%s6] sm:$0xff] %vm324, %v345
    %348 = vst.msk [vmem:[%s6 + $0x8] sm:$0xff] %vm324, %v346
    %v349 = vsel %vm263, 0.0, %v345
    %v350 = vsel %vm264, 0.0, %v346
    %v351 = vlaneseq
    %v352 = vshrl.u32 %v351, 7
    %v353 = vadd.s32 %v352, 8
    %v354 = vmul.u32 %v352, 8
    %v355 = vmul.u32 %v353, 8
    %vm356 = vcmp.ge.s32.totalorder %v282, %v354
    %vm357 = vcmp.ge.s32.totalorder %v282, %v355
    %v358 = vadd.s32 %v352, 1
    %v359 = vadd.s32 %v353, 1
    %v360 = vmul.u32 %v358, 8
    %v361 = vmul.u32 %v359, 8
    %vm362 = vcmp.lt.s32.totalorder %v282, %v360
    %vm363 = vcmp.lt.s32.totalorder %v282, %v361
    %vm364 = vmand %vm356, %vm362
    %vm365 = vmand %vm357, %vm363
    %368 = vrot.lane.b32.xlu0 %v349, 8
    %v369 = vpop.permute.xlu0 %368
    %370 = vrot.lane.b32.xlu0 %v350, 8
    %v371 = vpop.permute.xlu0 %370
    %374 = vrot.lane.b32.xlu0 %v349, 16
    %v375 = vpop.permute.xlu0 %374
    %376 = vrot.lane.b32.xlu0 %v350, 16
    %v377 = vpop.permute.xlu0 %376
    %380 = vrot.lane.b32.xlu0 %v349, 24
    %v381 = vpop.permute.xlu0 %380
    %382 = vrot.lane.b32.xlu0 %v350, 24
    %v383 = vpop.permute.xlu0 %382
    %386 = vrot.lane.b32.xlu0 %v349, 32
    %v387 = vpop.permute.xlu0 %386
    %388 = vrot.lane.b32.xlu0 %v350, 32
    %v389 = vpop.permute.xlu0 %388
    %392 = vrot.lane.b32.xlu0 %v349, 40
    %v393 = vpop.permute.xlu0 %392
    %394 = vrot.lane.b32.xlu0 %v350, 40
    %v395 = vpop.permute.xlu0 %394
    %398 = vrot.lane.b32.xlu0 %v349, 48
    %v399 = vpop.permute.xlu0 %398
    %400 = vrot.lane.b32.xlu0 %v350, 48
    %v401 = vpop.permute.xlu0 %400
    %404 = vrot.lane.b32.xlu0 %v349, 56
    %v405 = vpop.permute.xlu0 %404
    %406 = vrot.lane.b32.xlu0 %v350, 56
    %v407 = vpop.permute.xlu0 %406
    %410 = vrot.lane.b32.xlu0 %v349, 64
    %v411 = vpop.permute.xlu0 %410
    %412 = vrot.lane.b32.xlu0 %v350, 64
    %v413 = vpop.permute.xlu0 %412
    %416 = vrot.lane.b32.xlu0 %v349, 72
    %v417 = vpop.permute.xlu0 %416
    %418 = vrot.lane.b32.xlu0 %v350, 72
    %v419 = vpop.permute.xlu0 %418
    %422 = vrot.lane.b32.xlu0 %v349, 80
    %v423 = vpop.permute.xlu0 %422
    %424 = vrot.lane.b32.xlu0 %v350, 80
    %v425 = vpop.permute.xlu0 %424
    %428 = vrot.lane.b32.xlu0 %v349, 88
    %v429 = vpop.permute.xlu0 %428
    %430 = vrot.lane.b32.xlu0 %v350, 88
    %v431 = vpop.permute.xlu0 %430
    %434 = vrot.lane.b32.xlu0 %v349, 96
    %v435 = vpop.permute.xlu0 %434
    %436 = vrot.lane.b32.xlu0 %v350, 96
    %v437 = vpop.permute.xlu0 %436
    %440 = vrot.lane.b32.xlu0 %v349, 104
    %v441 = vpop.permute.xlu0 %440
    %442 = vrot.lane.b32.xlu0 %v350, 104
    %v443 = vpop.permute.xlu0 %442
    %446 = vrot.lane.b32.xlu0 %v349, 112
    %v447 = vpop.permute.xlu0 %446
    %448 = vrot.lane.b32.xlu0 %v350, 112
    %v449 = vpop.permute.xlu0 %448
    %452 = vrot.lane.b32.xlu0 %v349, 120
    %v453 = vpop.permute.xlu0 %452
    %454 = vrot.lane.b32.xlu0 %v350, 120
    %v455 = vpop.permute.xlu0 %454
    %v458 = vsel %vm324, %v349, %v369
    %v459 = vsel %vm324, %v350, %v371
    %vm460 = vcmask 130048
    %v461 = vsel %vm460, %v458, %v375
    %v462 = vsel %vm460, %v459, %v377
    %vm463 = vcmask 195584
    %v464 = vsel %vm463, %v461, %v381
    %v465 = vsel %vm463, %v462, %v383
    %v466 = vsel %vm79, %v464, %v387
    %v467 = vsel %vm79, %v465, %v389
    %vm468 = vcmask 326656
    %v469 = vsel %vm468, %v466, %v393
    %v470 = vsel %vm468, %v467, %v395
    %vm471 = vcmask 392192
    %v472 = vsel %vm471, %v469, %v399
    %v473 = vsel %vm471, %v470, %v401
    %vm474 = vcmask 457728
    %v475 = vsel %vm474, %v472, %v405
    %v476 = vsel %vm474, %v473, %v407
    %vm477 = vcmask 523264
    %v478 = vsel %vm477, %v475, %v411
    %v479 = vsel %vm477, %v476, %v413
    %vm480 = vcmask 588800
    %v481 = vsel %vm480, %v478, %v417
    %v482 = vsel %vm480, %v479, %v419
    %vm483 = vcmask 654336
    %v484 = vsel %vm483, %v481, %v423
    %v485 = vsel %vm483, %v482, %v425
    %vm486 = vcmask 719872
    %v487 = vsel %vm486, %v484, %v429
    %v488 = vsel %vm486, %v485, %v431
    %vm489 = vcmask 785408
    %v490 = vsel %vm489, %v487, %v435
    %v491 = vsel %vm489, %v488, %v437
    %vm492 = vcmask 850944
    %v493 = vsel %vm492, %v490, %v441
    %v494 = vsel %vm492, %v491, %v443
    %vm495 = vcmask 916480
    %v496 = vsel %vm495, %v493, %v447
    %v497 = vsel %vm495, %v494, %v449
    %vm498 = vcmask 982016
    %v499 = vsel %vm498, %v496, %v453
    %v500 = vsel %vm498, %v497, %v455
    %v501 = vsel %vm364, %v499, 0.0
    %v502 = vsel %vm365, %v500, 0.0
    %503 = vmatpush.msra.mxu0 %v191
    %504 = vmatpush.msra.mxu0 %v188
    %505 = vmatpush.msra.mxu0 %v185
    %506 = vmatpush.msra.mxu0 %v182
    %507 = vmatpush.msra.mxu0 %v179
    %508 = vmatpush.msra.mxu0 %v176
    %509 = vmatpush.msra.mxu0 %v173
    %510 = vmatpush.msra.mxu0 %v170
    %511 = vmatpush.msra.mxu0 %v167
    %512 = vmatpush.msra.mxu0 %v164
    %513 = vmatpush.msra.mxu0 %v161
    %514 = vmatpush.msra.mxu0 %v158
    %515 = vmatpush.msra.mxu0 %v155
    %516 = vmatpush.msra.mxu0 %v152
    %517 = vmatpush.msra.mxu0 %v149
    %518 = vmatpush.msra.mxu0 %v146
    %519 = vmatmul.f32.gmra.mxu0 %v501
    %v520 = vpop.f32.mrf.mxu0
    %v521 = vadd.f32 0.0, %v520
    %522 = vmatmul.f32.gmra.mxu0 %v502
    %v523 = vpop.f32.mrf.mxu0
    %v524 = vadd.f32 0.0, %v523
    %525 = vdwg.mxu0
    %526 = vst.msk [vmem:[#allocation7] sm:$0xff] %vm79, %v521
    %527 = vst.msk [vmem:[#allocation7 + $0x8] sm:$0xff] %vm79, %v524
    // Predicated region
    $region30: #{tpu_custom_call.1} parent=1 // pred_check
      _
    $region31: #{tpu_custom_call.1} parent=1 // pred_check_branch
      %529 = sbr.rel (0) target = $region33
    $region32: #{tpu_custom_call.1} parent=1 // pred_region
      %531 = vsyncadd [#allocation4], 0
      %s532 = sshll.u32 [#allocation7], 4
      %s533 = int_to_ptr.vmem [resolvable:$true] %s532
      %s534 = sshll.u32 %s5, 4
      %s535 = int_to_ptr.hbm [resolvable:$true] %s534
      %540 = dma.vmem_to_hbm [thread:$0]  %s533, 256, %s535, [#allocation4], 128, 128, 8
    $region33: #{tpu_custom_call.1} parent=1 // pred_fallthru
      _
    // Predicated region
    $region34: #{tpu_custom_call.1} parent=1 // pred_check
      _
    $region35: #{tpu_custom_call.1} parent=1 // pred_check_branch
      %542 = sbr.rel (0) target = $region37
    $region36: #{tpu_custom_call.1} parent=1 // pred_region
      _
    $region37: #{tpu_custom_call.1} parent=1 // pred_fallthru
      _
    // Predicated region
    $region38: #{tpu_custom_call.1} parent=1 // pred_check
      _
    $region39: #{tpu_custom_call.1} parent=1 // pred_check_branch
      %544 = sbr.rel (0) target = $region41
    $region40: #{tpu_custom_call.1} parent=1 // pred_region
      %546 = dma.done [#allocation4], 256
    $region41: #{tpu_custom_call.1} parent=1 // pred_fallthru
      _
    // Predicated region
    $region42: #{tpu_custom_call.1} parent=1 // pred_check
      _
    $region43: #{tpu_custom_call.1} parent=1 // pred_check_branch
      %548 = sbr.rel (0) target = $region45
    $region44: #{tpu_custom_call.1} parent=1 // pred_region
      _
    $region45: #{tpu_custom_call.1} parent=1 // pred_fallthru
      _
    %549 = vsyncpa [#allocation3], 1
    %550 = vsyncpa [#allocation6], 1
    %551 = vsyncpa [#allocation4], 1

</llo_original>
